<compile_context>
chip_gen: v7x
topology: tpu7x:2x2x1
jax: 0.10.0
libtpu: 0.0.40
codegen_flags: <defaults>
</compile_context>

<pallas_src>
import functools

import jax
import jax.numpy as jnp
from jax.experimental import pallas as pl
from jax.experimental.pallas import tpu as pltpu

# ----------------------------- hyper-params ---------------------------------
BATCH = 2
ENC_SZ = 32                 # per-image encoding size; forward gets (start, goal)
INPUT_SZ = 2 * ENC_SZ       # Predictor input_sz (concat of start + goal enc)
HIDDEN_SIZE = 32            # cell.get_state_size()
OUT_SZ = 2 * HIDDEN_SIZE    # Predictor output_size
MID_SZ = 128                # hp.init_mlp_mid_sz
NUM_LAYERS = 3              # hp.init_mlp_layers
NEG_SLOPE = 0.2             # LeakyReLU slope used by spirl's fc blocks
LANE = 128                  # TPU lane width (pad final output to this)

# TODO(synk): spirl's Predictor can optionally insert batch-norm between layers
# (hp.normalization='batch'); omitted here (equivalent to normalization='none').


# ------------------------------- kernel -------------------------------------
def _mlp_init_kernel(num_layers, neg_slope, *refs):
    """Fused MLP: (start, goal) -> [Linear -> LeakyReLU]*(L-1) -> Linear.

    refs = (start_ref, goal_ref,
            w0a, w0b,                 # layer-0 weight split along its input dim
            w1, ..., w_{L-1},         # remaining weights (last one lane-padded)
            bias_pack,                # (num_layers, pad_width) f32, one row/layer
            out_ref)                  # (B, pad_width) lane-dense output
    All operands live fully in VMEM; a single grid-less step does everything.
    Weights are bf16; accumulation is f32 on the MXU.
    """
    s_ref, g_ref, w0a_ref, w0b_ref = refs[0], refs[1], refs[2], refs[3]
    w_refs = refs[4:4 + (num_layers - 1)]
    b_ref = refs[4 + (num_layers - 1)]
    out_ref = refs[-1]

    # Layer 0: input concat folded into a split-weight matmul.
    act = (jnp.dot(s_ref[...].astype(jnp.bfloat16), w0a_ref[...],
                   preferred_element_type=jnp.float32)
           + jnp.dot(g_ref[...].astype(jnp.bfloat16), w0b_ref[...],
                     preferred_element_type=jnp.float32)
           + b_ref[0:1, :w0a_ref.shape[1]])
    act = jnp.maximum(act, neg_slope * act)          # LeakyReLU (single VPU max)

    # Remaining layers.
    for i in range(1, num_layers):
        w = w_refs[i - 1]
        act = (jnp.dot(act.astype(jnp.bfloat16), w[...],
                       preferred_element_type=jnp.float32)
               + b_ref[i:i + 1, :w.shape[1]])
        if i < num_layers - 1:
            act = jnp.maximum(act, neg_slope * act)  # LeakyReLU

    out_ref[...] = act.astype(out_ref.dtype)


# --------------------------- parameter packing -------------------------------
def prepare_params(params):
    """One-time prep: split W0 (concat fusion), cast weights to bf16,
    lane-pad the last layer to a multiple of 128, pack all biases (f32)
    into a single (num_layers, width) buffer.

    params: list of (W_i, b_i) with W_i [in, out] f32, b_i [1, out] f32.
    Returns (packed_operands, padded_out_dim).
    """
    num_layers = len(params)
    w0, _ = params[0]
    enc = w0.shape[0] // 2

    out_dims = [w.shape[1] for w, _ in params]
    last_out = out_dims[-1]
    last_pad = ((last_out + LANE - 1) // LANE) * LANE
    width = max(out_dims[:-1] + [last_pad])

    # Layer-0 split (folds the wrapper-level concat into two matmuls).
    w0a = w0[:enc].astype(jnp.bfloat16)
    w0b = w0[enc:].astype(jnp.bfloat16)

    w_rest = []
    for i in range(1, num_layers):
        w = params[i][0]
        if i == num_layers - 1 and last_pad != last_out:
            w = jnp.pad(w, ((0, 0), (0, last_pad - last_out)))  # zero lanes
        w_rest.append(w.astype(jnp.bfloat16))

    bias_pack = jnp.zeros((num_layers, width), jnp.float32)
    for i, (_, b) in enumerate(params):
        bias_pack = bias_pack.at[i, :b.shape[1]].set(b[0])

    return (w0a, w0b, *w_rest, bias_pack), last_pad


# ------------------------------ wrapper --------------------------------------
def mlp_lstm_cell_initializer(enc_start, enc_goal, packed, out_pad, hidden_size):
    """Run the fused kernel and split the lane-dense output into (h0, c0)."""
    batch = enc_start.shape[0]
    vmem = pl.BlockSpec(memory_space=pltpu.MemorySpace.VMEM)
    operands = (enc_start, enc_goal) + tuple(packed)

    # Cost hint for XLA's scheduler (kernel is latency-bound).
    flops = 0
    for op in packed:
        if op.ndim == 2 and op.dtype == jnp.bfloat16:          # weight tensors
            flops += 2 * batch * op.shape[0] * op.shape[1]
    bytes_accessed = (sum(int(x.size) * x.dtype.itemsize for x in operands)
                      + batch * out_pad * enc_start.dtype.itemsize)

    kernel = functools.partial(_mlp_init_kernel, NUM_LAYERS, NEG_SLOPE)

    hidden_pad = pl.pallas_call(
        kernel,
        out_shape=jax.ShapeDtypeStruct((batch, out_pad), enc_start.dtype),
        in_specs=[vmem] * len(operands),
        out_specs=vmem,
        cost_estimate=pl.CostEstimate(flops=flops, transcendentals=0,
                                      bytes_accessed=bytes_accessed),
    )(*operands)

    hidden = hidden_pad[:, :2 * hidden_size]          # drop padded lanes (free slice)
    return hidden[:, :hidden_size], hidden[:, hidden_size:]


# ------------------------- deterministic param init --------------------------
def init_params(key):
    """Build NUM_LAYERS Linear layers: INPUT_SZ -> MID_SZ -> ... -> OUT_SZ (f32)."""
    dims = [INPUT_SZ] + [MID_SZ] * (NUM_LAYERS - 1) + [OUT_SZ]
    params = []
    for i in range(NUM_LAYERS):
        key, kw, kb = jax.random.split(key, 3)
        fan_in = dims[i]
        scale = 1.0 / jnp.sqrt(jnp.float32(fan_in))
        w = jax.random.uniform(kw, (dims[i], dims[i + 1]), jnp.float32,
                               minval=-scale, maxval=scale)
        b = jax.random.uniform(kb, (1, dims[i + 1]), jnp.float32,
                               minval=-scale, maxval=scale)
        params.append((w, b))
    return params


# ------------------------------ reference ------------------------------------
def reference(enc_start, enc_goal, params):
    """Pure-f32 reference matching the PyTorch module exactly."""
    x = jnp.concatenate([enc_start, enc_goal], axis=1)
    act = x
    for i, (w, b) in enumerate(params):
        act = act @ w + b
        if i < NUM_LAYERS - 1:
            act = jnp.where(act > 0, act, NEG_SLOPE * act)
    return act[:, :HIDDEN_SIZE], act[:, HIDDEN_SIZE:]


# --------------------------------- main ---------------------------------------
if __name__ == "__main__":
    key = jax.random.PRNGKey(0)
    key, k1, k2, kp = jax.random.split(key, 4)

    enc_start = jax.random.normal(k1, (BATCH, ENC_SZ), jnp.float32)
    enc_goal = jax.random.normal(k2, (BATCH, ENC_SZ), jnp.float32)
    params = init_params(kp)

    packed, out_pad = prepare_params(params)

    h0, c0 = mlp_lstm_cell_initializer(enc_start, enc_goal, packed, out_pad,
                                       HIDDEN_SIZE)
    jax.block_until_ready((h0, c0))

    h_ref, c_ref = reference(enc_start, enc_goal, params)
    assert h0.shape == (BATCH, HIDDEN_SIZE) and c0.shape == (BATCH, HIDDEN_SIZE)
    # bf16 weights with f32 accumulation -> slightly looser tolerance vs f32 ref.
    assert jnp.allclose(h0, h_ref, atol=2e-2, rtol=2e-2)
    assert jnp.allclose(c0, c_ref, atol=2e-2, rtol=2e-2)

    print("KERNEL_OK")
</pallas_src>

<mosaic_0001>
module attributes {stable_mosaic.version = 11 : i64} {
  func.func @_mlp_init_kernel(%arg0: memref<2x32xf32, #tpu.memory_space<vmem>>, %arg1: memref<2x32xf32, #tpu.memory_space<vmem>>, %arg2: memref<32x128xbf16, #tpu.memory_space<vmem>>, %arg3: memref<32x128xbf16, #tpu.memory_space<vmem>>, %arg4: memref<128x128xbf16, #tpu.memory_space<vmem>>, %arg5: memref<128x128xbf16, #tpu.memory_space<vmem>>, %arg6: memref<3x128xf32, #tpu.memory_space<vmem>>, %arg7: memref<2x128xf32, #tpu.memory_space<vmem>>) attributes {dimension_semantics = [], scalar_prefetch = 0 : i64, scratch_operands = 0 : i64, tpu.core_type = #tpu.core_type<tc>} {
    %c0 = arith.constant 0 : index
    %c0_0 = arith.constant 0 : index
    %0 = vector.load %arg0[%c0, %c0_0] : memref<2x32xf32, #tpu.memory_space<vmem>>, vector<2x32xf32>
    %1 = arith.truncf %0 : vector<2x32xf32> to vector<2x32xbf16>
    %c0_1 = arith.constant 0 : index
    %c0_2 = arith.constant 0 : index
    %2 = vector.load %arg2[%c0_1, %c0_2] : memref<32x128xbf16, #tpu.memory_space<vmem>>, vector<32x128xbf16>
    %cst = arith.constant dense<0.000000e+00> : vector<2x128xf32>
    %3 = tpu.matmul %1, %2, %cst {dimension_numbers = #tpu.dot_dimension_numbers<[1], [0], [0], [1], [0, 0, 1, 1], [], []>} : vector<2x32xbf16>, vector<32x128xbf16>, vector<2x128xf32> -> vector<2x128xf32>
    %c0_3 = arith.constant 0 : index
    %c0_4 = arith.constant 0 : index
    %4 = vector.load %arg1[%c0_3, %c0_4] : memref<2x32xf32, #tpu.memory_space<vmem>>, vector<2x32xf32>
    %5 = arith.truncf %4 : vector<2x32xf32> to vector<2x32xbf16>
    %c0_5 = arith.constant 0 : index
    %c0_6 = arith.constant 0 : index
    %6 = vector.load %arg3[%c0_5, %c0_6] : memref<32x128xbf16, #tpu.memory_space<vmem>>, vector<32x128xbf16>
    %cst_7 = arith.constant dense<0.000000e+00> : vector<2x128xf32>
    %7 = tpu.matmul %5, %6, %cst_7 {dimension_numbers = #tpu.dot_dimension_numbers<[1], [0], [0], [1], [0, 0, 1, 1], [], []>} : vector<2x32xbf16>, vector<32x128xbf16>, vector<2x128xf32> -> vector<2x128xf32>
    %8 = arith.addf %3, %7 : vector<2x128xf32>
    %c0_8 = arith.constant 0 : index
    %c0_9 = arith.constant 0 : index
    %9 = vector.load %arg6[%c0_8, %c0_9] : memref<3x128xf32, #tpu.memory_space<vmem>>, vector<1x128xf32>
    %10 = vector.broadcast %9 : vector<1x128xf32> to vector<2x128xf32>
    %11 = arith.addf %8, %10 : vector<2x128xf32>
    %cst_10 = arith.constant 2.000000e-01 : f32
    %12 = vector.broadcast %cst_10 : f32 to vector<2x128xf32>
    %13 = arith.mulf %12, %11 : vector<2x128xf32>
    %14 = arith.maximumf %11, %13 : vector<2x128xf32>
    %15 = arith.truncf %14 : vector<2x128xf32> to vector<2x128xbf16>
    %c0_11 = arith.constant 0 : index
    %c0_12 = arith.constant 0 : index
    %16 = vector.load %arg4[%c0_11, %c0_12] : memref<128x128xbf16, #tpu.memory_space<vmem>>, vector<128x128xbf16>
    %cst_13 = arith.constant dense<0.000000e+00> : vector<2x128xf32>
    %17 = tpu.matmul %15, %16, %cst_13 {dimension_numbers = #tpu.dot_dimension_numbers<[1], [0], [0], [1], [0, 0, 1, 1], [], []>} : vector<2x128xbf16>, vector<128x128xbf16>, vector<2x128xf32> -> vector<2x128xf32>
    %c1 = arith.constant 1 : index
    %c0_14 = arith.constant 0 : index
    %18 = vector.load %arg6[%c1, %c0_14] : memref<3x128xf32, #tpu.memory_space<vmem>>, vector<1x128xf32>
    %19 = vector.broadcast %18 : vector<1x128xf32> to vector<2x128xf32>
    %20 = arith.addf %17, %19 : vector<2x128xf32>
    %cst_15 = arith.constant 2.000000e-01 : f32
    %21 = vector.broadcast %cst_15 : f32 to vector<2x128xf32>
    %22 = arith.mulf %21, %20 : vector<2x128xf32>
    %23 = arith.maximumf %20, %22 : vector<2x128xf32>
    %24 = arith.truncf %23 : vector<2x128xf32> to vector<2x128xbf16>
    %c0_16 = arith.constant 0 : index
    %c0_17 = arith.constant 0 : index
    %25 = vector.load %arg5[%c0_16, %c0_17] : memref<128x128xbf16, #tpu.memory_space<vmem>>, vector<128x128xbf16>
    %cst_18 = arith.constant dense<0.000000e+00> : vector<2x128xf32>
    %26 = tpu.matmul %24, %25, %cst_18 {dimension_numbers = #tpu.dot_dimension_numbers<[1], [0], [0], [1], [0, 0, 1, 1], [], []>} : vector<2x128xbf16>, vector<128x128xbf16>, vector<2x128xf32> -> vector<2x128xf32>
    %c2 = arith.constant 2 : index
    %c0_19 = arith.constant 0 : index
    %27 = vector.load %arg6[%c2, %c0_19] : memref<3x128xf32, #tpu.memory_space<vmem>>, vector<1x128xf32>
    %28 = vector.broadcast %27 : vector<1x128xf32> to vector<2x128xf32>
    %29 = arith.addf %26, %28 : vector<2x128xf32>
    %c0_20 = arith.constant 0 : index
    %c0_21 = arith.constant 0 : index
    %30 = vector.load %arg7[%c0_20, %c0_21] : memref<2x128xf32, #tpu.memory_space<vmem>>, vector<2x128xf32>
    tpu.vector_store %arg7[%c0_20, %c0_21], %29 {strides = array<i32>} : memref<2x128xf32, #tpu.memory_space<vmem>>, vector<2x128xf32>,
    return
  }
}

</mosaic_0001>

<llo_original>
// kernel: tpu_custom_call.1
$region0: #{tpu_custom_call.1}
  #allocation0 [shape = 'u32[]', space=smem, size = 0x4, offset = 0x4, fixed_abs, tag = 'smem constant byte address 0x4 - core index']
  #allocation1 [shape = 'u32[144,128]{1,0:T(1,128)}', space=vmem, size = 0x12000, scoped, tag = 'internal scratch']
  %s0 = inlined_call_operand.hbm [shape: f32[2,32], index: 0, kind: input, shape index: {}]
  %s1 = inlined_call_operand.vmem [shape: f32[2,32], index: 1, kind: input, shape index: {}]
  %s2 = inlined_call_operand.hbm [shape: bf16[32,128], index: 2, kind: input, shape index: {}]
  %s3 = inlined_call_operand.hbm [shape: bf16[32,128], index: 3, kind: input, shape index: {}]
  %s4 = inlined_call_operand.hbm [shape: bf16[128,128], index: 4, kind: input, shape index: {}]
  %s5 = inlined_call_operand.hbm [shape: bf16[128,128], index: 5, kind: input, shape index: {}]
  %s6 = inlined_call_operand.vmem [shape: f32[3,128], index: 6, kind: input, shape index: {}]
  %s7 = inlined_call_operand.hbm [shape: f32[2,128], index: 7, kind: output, shape index: {}]
  %s8 = sld [smem:[#allocation0]]
  $region58: #{tpu_custom_call.1} parent=0
    _
  %s10 = ssub.s32 1, %s8
  %s11 = scalar_select 0, %s10, %s8
  $region1: #{tpu_custom_call.1} parent=0
    #allocation2 [shape = 'u8[1024]{0}', space=vmem, size = 0x400, scoped, tag = 'input window, operand 0, single buffered']
    #allocation3 [shape = 's32[1]{0}', space=sflag, size = 0x4, scoped, tag = 'scoped memory for tpu_custom_call.1']
    #allocation4 [shape = 's32[1]{0}', space=sflag, size = 0x4, scoped, tag = 'scoped memory for tpu_custom_call.1']
    #allocation5 [shape = 'u8[8192]{0}', space=vmem, size = 0x2000, scoped, tag = 'input window, operand 2, single buffered']
    #allocation6 [shape = 's32[1]{0}', space=sflag, size = 0x4, scoped, tag = 'scoped memory for tpu_custom_call.1']
    #allocation7 [shape = 'u8[8192]{0}', space=vmem, size = 0x2000, scoped, tag = 'input window, operand 3, single buffered']
    #allocation8 [shape = 'u8[32768]{0}', space=vmem, size = 0x8000, scoped, tag = 'input window, operand 4, single buffered']
    #allocation9 [shape = 's32[1]{0}', space=sflag, size = 0x4, scoped, tag = 'scoped memory for tpu_custom_call.1']
    #allocation10 [shape = 'u8[32768]{0}', space=vmem, size = 0x8000, scoped, tag = 'input window, operand 5, single buffered']
    #allocation11 [shape = 'u8[1024]{0}', space=vmem, size = 0x400, scoped, tag = 'output window, operand 0, single buffered']
    %12 = vsyncpa [#allocation3], 0
    %13 = vsyncpa [#allocation6], 0
    %14 = vsyncpa [#allocation9], 0
    %15 = vsyncpa [#allocation4], 0
    // Predicated region
    $region2: #{tpu_custom_call.1} parent=1 // pred_check
      _
    $region3: #{tpu_custom_call.1} parent=1 // pred_check_branch
      %17 = sbr.rel (0) target = $region5
    $region4: #{tpu_custom_call.1} parent=1 // pred_region
      %s19 = ssub.s32 32, 32
      %20 = vsyncadd [#allocation3], %s19
      %s22 = sshll.u32 [#allocation2], 4
      %s23 = int_to_ptr.vmem [resolvable:$true] %s22
      %25 = dma.hbm_to_vmem [thread:$0]  %s0, 32, %s23, [#allocation3]
    $region5: #{tpu_custom_call.1} parent=1 // pred_fallthru
      _
    // Predicated region
    $region6: #{tpu_custom_call.1} parent=1 // pred_check
      _
    $region7: #{tpu_custom_call.1} parent=1 // pred_check_branch
      %27 = sbr.rel (0) target = $region9
    $region8: #{tpu_custom_call.1} parent=1 // pred_region
      _
    $region9: #{tpu_custom_call.1} parent=1 // pred_fallthru
      _
    // Predicated region
    $region10: #{tpu_custom_call.1} parent=1 // pred_check
      _
    $region11: #{tpu_custom_call.1} parent=1 // pred_check_branch
      %29 = sbr.rel (0) target = $region13
    $region12: #{tpu_custom_call.1} parent=1 // pred_region
      %s31 = ssub.s32 256, 256
      %32 = vsyncadd [#allocation6], %s31
      %s33 = sshll.u32 [#allocation5], 4
      %s34 = int_to_ptr.vmem [resolvable:$true] %s33
      %39 = dma.hbm_to_vmem [thread:$0]  %s2, 256, %s34, [#allocation6], 64, 64, 4
    $region13: #{tpu_custom_call.1} parent=1 // pred_fallthru
      _
    // Predicated region
    $region14: #{tpu_custom_call.1} parent=1 // pred_check
      _
    $region15: #{tpu_custom_call.1} parent=1 // pred_check_branch
      %41 = sbr.rel (0) target = $region17
    $region16: #{tpu_custom_call.1} parent=1 // pred_region
      %s43 = ssub.s32 256, 256
      %44 = vsyncadd [#allocation6], %s43
      %s45 = sshll.u32 [#allocation7], 4
      %s46 = int_to_ptr.vmem [resolvable:$true] %s45
      %51 = dma.hbm_to_vmem [thread:$0]  %s3, 256, %s46, [#allocation6], 64, 64, 4
    $region17: #{tpu_custom_call.1} parent=1 // pred_fallthru
      _
    // Predicated region
    $region18: #{tpu_custom_call.1} parent=1 // pred_check
      _
    $region19: #{tpu_custom_call.1} parent=1 // pred_check_branch
      %53 = sbr.rel (0) target = $region21
    $region20: #{tpu_custom_call.1} parent=1 // pred_region
      %s55 = ssub.s32 1024, 1024
      %56 = vsyncadd [#allocation9], %s55
      %s57 = sshll.u32 [#allocation8], 4
      %s58 = int_to_ptr.vmem [resolvable:$true] %s57
      %63 = dma.hbm_to_vmem [thread:$0]  %s4, 1024, %s58, [#allocation9], 64, 64, 4
    $region21: #{tpu_custom_call.1} parent=1 // pred_fallthru
      _
    // Predicated region
    $region22: #{tpu_custom_call.1} parent=1 // pred_check
      _
    $region23: #{tpu_custom_call.1} parent=1 // pred_check_branch
      %65 = sbr.rel (0) target = $region25
    $region24: #{tpu_custom_call.1} parent=1 // pred_region
      %s67 = ssub.s32 1024, 1024
      %68 = vsyncadd [#allocation9], %s67
      %s69 = sshll.u32 [#allocation10], 4
      %s70 = int_to_ptr.vmem [resolvable:$true] %s69
      %75 = dma.hbm_to_vmem [thread:$0]  %s5, 1024, %s70, [#allocation9], 64, 64, 4
    $region25: #{tpu_custom_call.1} parent=1 // pred_fallthru
      _
    // Predicated region
    $region26: #{tpu_custom_call.1} parent=1 // pred_check
      _
    $region27: #{tpu_custom_call.1} parent=1 // pred_check_branch
      %77 = sbr.rel (0) target = $region29
    $region28: #{tpu_custom_call.1} parent=1 // pred_region
      _
    $region29: #{tpu_custom_call.1} parent=1 // pred_fallthru
      _
    // Predicated region
    $region30: #{tpu_custom_call.1} parent=1 // pred_check
      _
    $region31: #{tpu_custom_call.1} parent=1 // pred_check_branch
      %79 = sbr.rel (0) target = $region33
    $region32: #{tpu_custom_call.1} parent=1 // pred_region
      %80 = dma.done [#allocation3], 32
    $region33: #{tpu_custom_call.1} parent=1 // pred_fallthru
      _
    // Predicated region
    $region34: #{tpu_custom_call.1} parent=1 // pred_check
      _
    $region35: #{tpu_custom_call.1} parent=1 // pred_check_branch
      %82 = sbr.rel (0) target = $region37
    $region36: #{tpu_custom_call.1} parent=1 // pred_region
      %83 = dma.done [#allocation6], 256
    $region37: #{tpu_custom_call.1} parent=1 // pred_fallthru
      _
    // Predicated region
    $region38: #{tpu_custom_call.1} parent=1 // pred_check
      _
    $region39: #{tpu_custom_call.1} parent=1 // pred_check_branch
      %85 = sbr.rel (0) target = $region41
    $region40: #{tpu_custom_call.1} parent=1 // pred_region
      %86 = dma.done [#allocation6], 256
    $region41: #{tpu_custom_call.1} parent=1 // pred_fallthru
      _
    // Predicated region
    $region42: #{tpu_custom_call.1} parent=1 // pred_check
      _
    $region43: #{tpu_custom_call.1} parent=1 // pred_check_branch
      %88 = sbr.rel (0) target = $region45
    $region44: #{tpu_custom_call.1} parent=1 // pred_region
      %89 = dma.done [#allocation9], 1024
    $region45: #{tpu_custom_call.1} parent=1 // pred_fallthru
      _
    // Predicated region
    $region46: #{tpu_custom_call.1} parent=1 // pred_check
      _
    $region47: #{tpu_custom_call.1} parent=1 // pred_check_branch
      %91 = sbr.rel (0) target = $region49
    $region48: #{tpu_custom_call.1} parent=1 // pred_region
      %92 = dma.done [#allocation9], 1024
    $region49: #{tpu_custom_call.1} parent=1 // pred_fallthru
      _
    %v94 = vld [vmem:[#allocation2] sm:$0x3]
    %v95 = vpack.c.bf16 %v94, %v94
    %v96 = vld [vmem:[#allocation5] sm:$0xf]
    %v97 = vld [vmem:[#allocation5 + $0x4] sm:$0xf]
    %v98 = vld [vmem:[#allocation5 + $0x8] sm:$0xf]
    %v99 = vld [vmem:[#allocation5 + $0xc] sm:$0xf]
    %v100 = vld [vmem:[%s1] sm:$0x3]
    %v101 = vpack.c.bf16 %v100, %v100
    %v102 = vld [vmem:[#allocation7] sm:$0xf]
    %v103 = vld [vmem:[#allocation7 + $0x4] sm:$0xf]
    %v104 = vld [vmem:[#allocation7 + $0x8] sm:$0xf]
    %v105 = vld [vmem:[#allocation7 + $0xc] sm:$0xf]
    %v110 = vunpack.c.l.b16 %v102
    %v111 = vunpack.c.l.b16 %v103
    %v112 = vunpack.c.l.b16 %v104
    %v113 = vunpack.c.l.b16 %v105
    %v114 = vpack.c.b16 %v111, %v110
    %v115 = vpack.c.b16 %v113, %v112
    %vm118 = vcmask 261120
    %v120 = vsel %vm118, %v101, 0
    %122 = vmatprep.subr.bf16.mxu0 0
    %123 = vmatpush1.bf16.msra.mxu0 %v114
    %124 = vmatprep.subr.bf16.mxu0 0
    %125 = vmatpush1.bf16.msra.mxu0 %v115
    %126 = vmatprep.subr.bf16.mxu0 0
    %127 = vmatpush1.bf16.msra.mxu0 0
    %128 = vmatprep.subr.bf16.mxu0 0
    %129 = vmatpush1.bf16.msra.mxu0 0
    %130 = vmatprep.subr.bf16.mxu0 0
    %131 = vmatpush1.bf16.msra.mxu0 0
    %132 = vmatprep.subr.bf16.mxu0 0
    %133 = vmatpush1.bf16.msra.mxu0 0
    %134 = vmatprep.subr.bf16.mxu0 0
    %135 = vmatpush1.bf16.msra.mxu0 0
    %136 = vmatprep.subr.bf16.mxu0 0
    %137 = vmatpush1.bf16.msra.mxu0 0
    %138 = vmatprep.subr.bf16.mxu0 0
    %139 = vmatpush1.bf16.msra.mxu0 0
    %140 = vmatprep.subr.bf16.mxu0 0
    %141 = vmatpush1.bf16.msra.mxu0 0
    %142 = vmatprep.subr.bf16.mxu0 0
    %143 = vmatpush1.bf16.msra.mxu0 0
    %144 = vmatprep.subr.bf16.mxu0 0
    %145 = vmatpush1.bf16.msra.mxu0 0
    %146 = vmatprep.subr.bf16.mxu0 0
    %147 = vmatpush1.bf16.msra.mxu0 0
    %148 = vmatprep.subr.bf16.mxu0 0
    %149 = vmatpush1.bf16.msra.mxu0 0
    %150 = vmatprep.subr.bf16.mxu0 0
    %151 = vmatpush1.bf16.msra.mxu0 0
    %152 = vmatprep.subr.bf16.mxu0 0
    %153 = vmatpush1.bf16.msra.mxu0 0
    %154 = vmatprep.mubr.bf16.mxu0 0
    %155 = vmatmul.mubr.bf16.gmra.mrb[0].mxu0 %v120
    %v156 = vpop.f32.mrb[0].mxu0
    %v157 = vadd.f32 0.0, %v156
    %v158 = vpop.f32.mrb[0].mxu0
    %v159 = vpop.f32.mrb[0].mxu0
    %v160 = vpop.f32.mrb[0].mxu0
    %161 = vdwg.mxu0
    %v166 = vunpack.c.l.b16 %v96
    %v167 = vunpack.c.l.b16 %v97
    %v168 = vunpack.c.l.b16 %v98
    %v169 = vunpack.c.l.b16 %v99
    %v170 = vpack.c.b16 %v167, %v166
    %v171 = vpack.c.b16 %v169, %v168
    %v175 = vsel %vm118, %v95, 0
    %177 = vmatprep.subr.bf16.mxu0 0
    %178 = vmatpush1.bf16.msra.mxu0 %v170
    %179 = vmatprep.subr.bf16.mxu0 0
    %180 = vmatpush1.bf16.msra.mxu0 %v171
    %181 = vmatprep.subr.bf16.mxu0 0
    %182 = vmatpush1.bf16.msra.mxu0 0
    %183 = vmatprep.subr.bf16.mxu0 0
    %184 = vmatpush1.bf16.msra.mxu0 0
    %185 = vmatprep.subr.bf16.mxu0 0
    %186 = vmatpush1.bf16.msra.mxu0 0
    %187 = vmatprep.subr.bf16.mxu0 0
    %188 = vmatpush1.bf16.msra.mxu0 0
    %189 = vmatprep.subr.bf16.mxu0 0
    %190 = vmatpush1.bf16.msra.mxu0 0
    %191 = vmatprep.subr.bf16.mxu0 0
    %192 = vmatpush1.bf16.msra.mxu0 0
    %193 = vmatprep.subr.bf16.mxu0 0
    %194 = vmatpush1.bf16.msra.mxu0 0
    %195 = vmatprep.subr.bf16.mxu0 0
    %196 = vmatpush1.bf16.msra.mxu0 0
    %197 = vmatprep.subr.bf16.mxu0 0
    %198 = vmatpush1.bf16.msra.mxu0 0
    %199 = vmatprep.subr.bf16.mxu0 0
    %200 = vmatpush1.bf16.msra.mxu0 0
    %201 = vmatprep.subr.bf16.mxu0 0
    %202 = vmatpush1.bf16.msra.mxu0 0
    %203 = vmatprep.subr.bf16.mxu0 0
    %204 = vmatpush1.bf16.msra.mxu0 0
    %205 = vmatprep.subr.bf16.mxu0 0
    %206 = vmatpush1.bf16.msra.mxu0 0
    %207 = vmatprep.subr.bf16.mxu0 0
    %208 = vmatpush1.bf16.msra.mxu0 0
    %209 = vmatprep.mubr.bf16.mxu0 0
    %210 = vmatmul.mubr.bf16.gmra.mrb[0].mxu0 %v175
    %v211 = vpop.f32.mrb[0].mxu0
    %v212 = vadd.f32 %v157, %v211
    %v213 = vpop.f32.mrb[0].mxu0
    %v214 = vpop.f32.mrb[0].mxu0
    %v215 = vpop.f32.mrb[0].mxu0
    %216 = vdwg.mxu0
    %v217 = vld [vmem:[%s6] sm:$0x1]
    %v218 = vlaneseq
    %v219 = vshrl.u32 %v218, 7
    %v220 = vsub.s32 0, %v219
    %v221 = vrot.slane %v217, %v220
    %v222 = vadd.f32 %v212, %v221
    %v223 = vmul.f32 %v222, 0.2
    %v224 = vmax.f32 %v222, %v223
    %v225 = vpack.c.bf16 %v224, %v224
    %v226 = vld [vmem:[#allocation8] sm:$0xf]
    %v227 = vld [vmem:[#allocation8 + $0x4] sm:$0xf]
    %v228 = vld [vmem:[#allocation8 + $0x8] sm:$0xf]
    %v229 = vld [vmem:[#allocation8 + $0xc] sm:$0xf]
    %v230 = vld [vmem:[#allocation8 + $0x10] sm:$0xf]
    %v231 = vld [vmem:[#allocation8 + $0x14] sm:$0xf]
    %v232 = vld [vmem:[#allocation8 + $0x18] sm:$0xf]
    %v233 = vld [vmem:[#allocation8 + $0x1c] sm:$0xf]
    %v234 = vld [vmem:[#allocation8 + $0x20] sm:$0xf]
    %v235 = vld [vmem:[#allocation8 + $0x24] sm:$0xf]
    %v236 = vld [vmem:[#allocation8 + $0x28] sm:$0xf]
    %v237 = vld [vmem:[#allocation8 + $0x2c] sm:$0xf]
    %v238 = vld [vmem:[#allocation8 + $0x30] sm:$0xf]
    %v239 = vld [vmem:[#allocation8 + $0x34] sm:$0xf]
    %v240 = vld [vmem:[#allocation8 + $0x38] sm:$0xf]
    %v241 = vld [vmem:[#allocation8 + $0x3c] sm:$0xf]
    %v242 = vld [vmem:[%s6 + $0x1] sm:$0x1]
    %v243 = vlaneseq
    %v244 = vshrl.u32 %v243, 7
    %v245 = vsub.s32 0, %v244
    %v246 = vrot.slane %v242, %v245
    %v263 = vunpack.c.l.b16 %v226
    %v264 = vunpack.c.l.b16 %v227
    %v265 = vunpack.c.l.b16 %v228
    %v266 = vunpack.c.l.b16 %v229
    %v267 = vunpack.c.l.b16 %v230
    %v268 = vunpack.c.l.b16 %v231
    %v269 = vunpack.c.l.b16 %v232
    %v270 = vunpack.c.l.b16 %v233
    %v271 = vunpack.c.l.b16 %v234
    %v272 = vunpack.c.l.b16 %v235
    %v273 = vunpack.c.l.b16 %v236
    %v274 = vunpack.c.l.b16 %v237
    %v275 = vunpack.c.l.b16 %v238
    %v276 = vunpack.c.l.b16 %v239
    %v277 = vunpack.c.l.b16 %v240
    %v278 = vunpack.c.l.b16 %v241
    %v279 = vpack.c.b16 %v264, %v263
    %v280 = vpack.c.b16 %v266, %v265
    %v281 = vpack.c.b16 %v268, %v267
    %v282 = vpack.c.b16 %v270, %v269
    %v283 = vpack.c.b16 %v272, %v271
    %v284 = vpack.c.b16 %v274, %v273
    %v285 = vpack.c.b16 %v276, %v275
    %v286 = vpack.c.b16 %v278, %v277
    %295 = vmatprep.subr.bf16.mxu0 0
    %296 = vmatpush1.bf16.msra.mxu0 %v279
    %297 = vmatprep.subr.bf16.mxu0 0
    %298 = vmatpush1.bf16.msra.mxu0 %v280
    %299 = vmatprep.subr.bf16.mxu0 0
    %300 = vmatpush1.bf16.msra.mxu0 %v281
    %301 = vmatprep.subr.bf16.mxu0 0
    %302 = vmatpush1.bf16.msra.mxu0 %v282
    %303 = vmatprep.subr.bf16.mxu0 0
    %304 = vmatpush1.bf16.msra.mxu0 %v283
    %305 = vmatprep.subr.bf16.mxu0 0
    %306 = vmatpush1.bf16.msra.mxu0 %v284
    %307 = vmatprep.subr.bf16.mxu0 0
    %308 = vmatpush1.bf16.msra.mxu0 %v285
    %309 = vmatprep.subr.bf16.mxu0 0
    %310 = vmatpush1.bf16.msra.mxu0 %v286
    %311 = vmatprep.subr.bf16.mxu0 0
    %312 = vmatpush1.bf16.msra.mxu0 0
    %313 = vmatprep.subr.bf16.mxu0 0
    %314 = vmatpush1.bf16.msra.mxu0 0
    %315 = vmatprep.subr.bf16.mxu0 0
    %316 = vmatpush1.bf16.msra.mxu0 0
    %317 = vmatprep.subr.bf16.mxu0 0
    %318 = vmatpush1.bf16.msra.mxu0 0
    %319 = vmatprep.subr.bf16.mxu0 0
    %320 = vmatpush1.bf16.msra.mxu0 0
    %321 = vmatprep.subr.bf16.mxu0 0
    %322 = vmatpush1.bf16.msra.mxu0 0
    %323 = vmatprep.subr.bf16.mxu0 0
    %324 = vmatpush1.bf16.msra.mxu0 0
    %325 = vmatprep.subr.bf16.mxu0 0
    %326 = vmatpush1.bf16.msra.mxu0 0
    %327 = vmatprep.mubr.bf16.mxu0 0
    %328 = vmatmul.mubr.bf16.gmra.mrb[0].mxu0 %v225
    %v329 = vpop.f32.mrb[0].mxu0
    %v330 = vadd.f32 %v246, %v329
    %v331 = vpop.f32.mrb[0].mxu0
    %v332 = vpop.f32.mrb[0].mxu0
    %v333 = vpop.f32.mrb[0].mxu0
    %334 = vdwg.mxu0
    %v335 = vmul.f32 %v330, 0.2
    %v336 = vmax.f32 %v330, %v335
    %v337 = vpack.c.bf16 %v336, %v336
    %v338 = vld [vmem:[#allocation10] sm:$0xf]
    %v339 = vld [vmem:[#allocation10 + $0x4] sm:$0xf]
    %v340 = vld [vmem:[#allocation10 + $0x8] sm:$0xf]
    %v341 = vld [vmem:[#allocation10 + $0xc] sm:$0xf]
    %v342 = vld [vmem:[#allocation10 + $0x10] sm:$0xf]
    %v343 = vld [vmem:[#allocation10 + $0x14] sm:$0xf]
    %v344 = vld [vmem:[#allocation10 + $0x18] sm:$0xf]
    %v345 = vld [vmem:[#allocation10 + $0x1c] sm:$0xf]
    %v346 = vld [vmem:[#allocation10 + $0x20] sm:$0xf]
    %v347 = vld [vmem:[#allocation10 + $0x24] sm:$0xf]
    %v348 = vld [vmem:[#allocation10 + $0x28] sm:$0xf]
    %v349 = vld [vmem:[#allocation10 + $0x2c] sm:$0xf]
    %v350 = vld [vmem:[#allocation10 + $0x30] sm:$0xf]
    %v351 = vld [vmem:[#allocation10 + $0x34] sm:$0xf]
    %v352 = vld [vmem:[#allocation10 + $0x38] sm:$0xf]
    %v353 = vld [vmem:[#allocation10 + $0x3c] sm:$0xf]
    %v354 = vld [vmem:[%s6 + $0x2] sm:$0x1]
    %v355 = vlaneseq
    %v356 = vshrl.u32 %v355, 7
    %v357 = vsub.s32 0, %v356
    %v358 = vrot.slane %v354, %v357
    %v375 = vunpack.c.l.b16 %v338
    %v376 = vunpack.c.l.b16 %v339
    %v377 = vunpack.c.l.b16 %v340
    %v378 = vunpack.c.l.b16 %v341
    %v379 = vunpack.c.l.b16 %v342
    %v380 = vunpack.c.l.b16 %v343
    %v381 = vunpack.c.l.b16 %v344
    %v382 = vunpack.c.l.b16 %v345
    %v383 = vunpack.c.l.b16 %v346
    %v384 = vunpack.c.l.b16 %v347
    %v385 = vunpack.c.l.b16 %v348
    %v386 = vunpack.c.l.b16 %v349
    %v387 = vunpack.c.l.b16 %v350
    %v388 = vunpack.c.l.b16 %v351
    %v389 = vunpack.c.l.b16 %v352
    %v390 = vunpack.c.l.b16 %v353
    %v391 = vpack.c.b16 %v376, %v375
    %v392 = vpack.c.b16 %v378, %v377
    %v393 = vpack.c.b16 %v380, %v379
    %v394 = vpack.c.b16 %v382, %v381
    %v395 = vpack.c.b16 %v384, %v383
    %v396 = vpack.c.b16 %v386, %v385
    %v397 = vpack.c.b16 %v388, %v387
    %v398 = vpack.c.b16 %v390, %v389
    %407 = vmatprep.subr.bf16.mxu0 0
    %408 = vmatpush1.bf16.msra.mxu0 %v391
    %409 = vmatprep.subr.bf16.mxu0 0
    %410 = vmatpush1.bf16.msra.mxu0 %v392
    %411 = vmatprep.subr.bf16.mxu0 0
    %412 = vmatpush1.bf16.msra.mxu0 %v393
    %413 = vmatprep.subr.bf16.mxu0 0
    %414 = vmatpush1.bf16.msra.mxu0 %v394
    %415 = vmatprep.subr.bf16.mxu0 0
    %416 = vmatpush1.bf16.msra.mxu0 %v395
    %417 = vmatprep.subr.bf16.mxu0 0
    %418 = vmatpush1.bf16.msra.mxu0 %v396
    %419 = vmatprep.subr.bf16.mxu0 0
    %420 = vmatpush1.bf16.msra.mxu0 %v397
    %421 = vmatprep.subr.bf16.mxu0 0
    %422 = vmatpush1.bf16.msra.mxu0 %v398
    %423 = vmatprep.subr.bf16.mxu0 0
    %424 = vmatpush1.bf16.msra.mxu0 0
    %425 = vmatprep.subr.bf16.mxu0 0
    %426 = vmatpush1.bf16.msra.mxu0 0
    %427 = vmatprep.subr.bf16.mxu0 0
    %428 = vmatpush1.bf16.msra.mxu0 0
    %429 = vmatprep.subr.bf16.mxu0 0
    %430 = vmatpush1.bf16.msra.mxu0 0
    %431 = vmatprep.subr.bf16.mxu0 0
    %432 = vmatpush1.bf16.msra.mxu0 0
    %433 = vmatprep.subr.bf16.mxu0 0
    %434 = vmatpush1.bf16.msra.mxu0 0
    %435 = vmatprep.subr.bf16.mxu0 0
    %436 = vmatpush1.bf16.msra.mxu0 0
    %437 = vmatprep.subr.bf16.mxu0 0
    %438 = vmatpush1.bf16.msra.mxu0 0
    %439 = vmatprep.mubr.bf16.mxu0 0
    %440 = vmatmul.mubr.bf16.gmra.mrb[0].mxu0 %v337
    %v441 = vpop.f32.mrb[0].mxu0
    %v442 = vadd.f32 %v358, %v441
    %v443 = vpop.f32.mrb[0].mxu0
    %v444 = vpop.f32.mrb[0].mxu0
    %v445 = vpop.f32.mrb[0].mxu0
    %446 = vdwg.mxu0
    %447 = vst [vmem:[#allocation11] sm:$0x3] %v442
    // Predicated region
    $region50: #{tpu_custom_call.1} parent=1 // pred_check
      _
    $region51: #{tpu_custom_call.1} parent=1 // pred_check_branch
      %449 = sbr.rel (0) target = $region53
    $region52: #{tpu_custom_call.1} parent=1 // pred_region
      %s451 = ssub.s32 32, 32
      %452 = vsyncadd [#allocation4], %s451
      %s454 = sshll.u32 [#allocation11], 4
      %s455 = int_to_ptr.vmem [resolvable:$true] %s454
      %457 = dma.vmem_to_hbm [thread:$0]  %s455, 32, %s7, [#allocation4]
    $region53: #{tpu_custom_call.1} parent=1 // pred_fallthru
      _
    // Predicated region
    $region54: #{tpu_custom_call.1} parent=1 // pred_check
      _
    $region55: #{tpu_custom_call.1} parent=1 // pred_check_branch
      %459 = sbr.rel (0) target = $region57
    $region56: #{tpu_custom_call.1} parent=1 // pred_region
      %460 = dma.done [#allocation4], 32
    $region57: #{tpu_custom_call.1} parent=1 // pred_fallthru
      _
    %461 = vsyncpa [#allocation3], 1
    %462 = vsyncpa [#allocation6], 1
    %463 = vsyncpa [#allocation9], 1
    %464 = vsyncpa [#allocation4], 1

</llo_original>
